<compile_context>
chip_gen: v7x
topology: tpu7x:2x2x1
jax: 0.10.0
libtpu: 0.0.40
codegen_flags: <defaults>
</compile_context>

<pallas_src>
import math
import functools

import jax
import jax.numpy as jnp
from jax.experimental import pallas as pl
from jax.experimental.pallas import tpu as pltpu


def _round_up(n: int, m: int) -> int:
    return ((n + m - 1) // m) * m


def _time_encoding_kernel(pos_ref, pe_ref, x_ref, o_ref, *, scale):
    """One row-tile: gather pe[pos] and add to x.

    pos_ref: (T, 1) int32   precomputed positions for this tile
    pe_ref : (L, D) float32 positional-encoding table (resident across the grid)
    x_ref  : (T, D) x-dtype input tile
    o_ref  : (T, D) x-dtype output tile
    """
    pos = pos_ref[...]                                   # (T, 1) int32
    pe = pe_ref[...]                                     # (L, D) f32
    x = x_ref[...].astype(jnp.float32)                   # (T, D) f32 compute

    T = pos.shape[0]
    L = pe.shape[0]

    # Gather pe[pos] via a one-hot matmul on the MXU (exact in f32: single 1 per row).
    lane_iota = jax.lax.broadcasted_iota(jnp.int32, (T, L), 1)
    onehot = (lane_iota == pos).astype(jnp.float32)      # (T, L)
    enc = jnp.dot(onehot, pe, preferred_element_type=jnp.float32)  # (T, D)

    # scale, (dropout = identity in eval mode), add to x; store in x's dtype.
    o_ref[...] = (x + jnp.float32(scale) * enc).astype(o_ref.dtype)


def make_sinusoidal_pe(max_len: int, d_model: int) -> jnp.ndarray:
    """Deterministic sinusoidal table, identical to the PyTorch __init__."""
    position = jnp.arange(0, max_len, dtype=jnp.float32)[:, None]          # (L, 1)
    div_term = jnp.exp(jnp.arange(0, d_model, 2, dtype=jnp.float32)
                       * (-math.log(10000.0) / d_model))                   # (D/2,)
    pe = jnp.zeros((max_len, d_model), dtype=jnp.float32)
    pe = pe.at[:, 0::2].set(jnp.sin(position * div_term))
    pe = pe.at[:, 1::2].set(jnp.cos(position * div_term))
    return pe


def time_encoding_forward(time_values: jnp.ndarray,
                          x: jnp.ndarray,
                          pe: jnp.ndarray,
                          scale: float = 1.0,
                          tile_rows: int = 512) -> jnp.ndarray:
    """time_values: [B, S], x: [B, S, D], pe: [max_len, D].

    Returns [1, B, S, D] in x's dtype (matches the PyTorch broadcast of pe[:, pos]).
    """
    B, S = time_values.shape
    D = x.shape[-1]
    L = pe.shape[0]
    BS = B * S

    # ---- global min/max + position computation hoisted out of the kernel ----
    tv = time_values.reshape(BS).astype(jnp.float32)
    tmin = jnp.min(tv)
    tmax = jnp.max(tv)
    has_range = tmax > tmin
    denom = jnp.where(has_range, tmax - tmin, jnp.float32(1.0))
    pos_f = jnp.where(has_range,
                      (tv - tmin) / denom * jnp.float32(L - 1),
                      jnp.zeros_like(tv))
    pos = jnp.clip(pos_f.astype(jnp.int32), 0, L - 1)            # (BS,) int32

    x_flat = x.reshape(BS, D)

    # ---- tile the token axis; pad rows up to a multiple of the tile ----
    T = max(8, min(tile_rows, _round_up(BS, 8)))
    BS_pad = _round_up(BS, T)
    if BS_pad != BS:
        padding = BS_pad - BS
        x_flat = jnp.pad(x_flat, ((0, padding), (0, 0)))
        pos = jnp.pad(pos, ((0, padding),))
    pos2 = pos.reshape(BS_pad, 1)

    grid = (BS_pad // T,)

    out = pl.pallas_call(
        functools.partial(_time_encoding_kernel, scale=float(scale)),
        out_shape=jax.ShapeDtypeStruct((BS_pad, D), x.dtype),
        grid=grid,
        in_specs=[
            pl.BlockSpec((T, 1), lambda i: (i, 0)),      # pos tile
            pl.BlockSpec((L, D), lambda i: (0, 0)),      # pe, resident across grid
            pl.BlockSpec((T, D), lambda i: (i, 0)),      # x tile
        ],
        out_specs=pl.BlockSpec((T, D), lambda i: (i, 0)),
        compiler_params=pltpu.CompilerParams(
            dimension_semantics=("parallel",),
            vmem_limit_bytes=32 * 1024 * 1024,
        ),
    )(pos2, pe.astype(jnp.float32), x_flat)

    out = out[:BS].reshape(B, S, D)
    # PyTorch: x[B,S,D] + encoding[1,B,S,D] -> [1,B,S,D]
    return out[None]


if __name__ == "__main__":
    # Small, deterministic configuration (lane-dense D).
    d_model = 128
    max_len = 64
    scale = 1.0
    B, S = 2, 8

    key = jax.random.PRNGKey(0)
    k_tv, k_x = jax.random.split(key)
    time_values = jax.random.uniform(k_tv, (B, S), dtype=jnp.float32) * 10.0
    x = jax.random.normal(k_x, (B, S, d_model), dtype=jnp.float32)

    pe = make_sinusoidal_pe(max_len, d_model)

    result = time_encoding_forward(time_values, x, pe, scale=scale)
    jax.block_until_ready(result)

    # Pure-JAX reference (same math, no Pallas).
    tmin, tmax = time_values.min(), time_values.max()
    pos = jnp.clip(((time_values - tmin) / (tmax - tmin) * (max_len - 1)).astype(jnp.int32),
                   0, max_len - 1)
    ref = (x + scale * pe[pos])[None]
    assert result.shape == ref.shape, "shape mismatch vs JAX reference"
    assert jnp.allclose(result, ref, atol=1e-5), "mismatch vs JAX reference"

    print("KERNEL_OK")
</pallas_src>

<mosaic_0001>
module attributes {stable_mosaic.version = 11 : i64} {
  func.func @_time_encoding_kernel(%arg0: i32, %arg1: memref<16x1xi32, #tpu.memory_space<vmem>>, %arg2: memref<64x128xf32, #tpu.memory_space<vmem>>, %arg3: memref<16x128xf32, #tpu.memory_space<vmem>>, %arg4: memref<16x128xf32, #tpu.memory_space<vmem>>) attributes {dimension_semantics = [#tpu.dimension_semantics<parallel>], iteration_bounds = array<i64: 1>, scalar_prefetch = 0 : i64, scratch_operands = 0 : i64, tpu.core_type = #tpu.core_type<tc>, window_params = [{transform_indices = @transform_0, window_bounds = array<i64: 16, 1>}, {pipeline_mode = #tpu.pipeline_mode<synchronous>, transform_indices = @transform_1, window_bounds = array<i64: 64, 128>}, {transform_indices = @transform_2, window_bounds = array<i64: 16, 128>}, {transform_indices = @transform_3, window_bounds = array<i64: 16, 128>}]} {
    %c0 = arith.constant 0 : index
    %c0_0 = arith.constant 0 : index
    %0 = vector.load %arg1[%c0, %c0_0] : memref<16x1xi32, #tpu.memory_space<vmem>>, vector<16x1xi32>
    %c0_1 = arith.constant 0 : index
    %c0_2 = arith.constant 0 : index
    %1 = vector.load %arg2[%c0_1, %c0_2] : memref<64x128xf32, #tpu.memory_space<vmem>>, vector<64x128xf32>
    %c0_3 = arith.constant 0 : index
    %c0_4 = arith.constant 0 : index
    %2 = vector.load %arg3[%c0_3, %c0_4] : memref<16x128xf32, #tpu.memory_space<vmem>>, vector<16x128xf32>
    %3 = tpu.iota {dimensions = array<i32: 1>} : vector<16x64xi32>
    %4 = vector.broadcast %0 : vector<16x1xi32> to vector<16x64xi32>
    %5 = arith.cmpi eq, %3, %4 : vector<16x64xi32>
    %6 = arith.extui %5 : vector<16x64xi1> to vector<16x64xi32>
    %7 = arith.sitofp %6 : vector<16x64xi32> to vector<16x64xf32>
    %cst = arith.constant dense<0.000000e+00> : vector<16x128xf32>
    %8 = tpu.matmul %7, %1, %cst {dimension_numbers = #tpu.dot_dimension_numbers<[1], [0], [0], [1], [0, 0, 1, 1], [], []>} : vector<16x64xf32>, vector<64x128xf32>, vector<16x128xf32> -> vector<16x128xf32>
    %cst_5 = arith.constant 1.000000e+00 : f32
    %9 = vector.broadcast %cst_5 : f32 to vector<16x128xf32>
    %10 = arith.mulf %9, %8 : vector<16x128xf32>
    %11 = arith.addf %2, %10 : vector<16x128xf32>
    %c0_6 = arith.constant 0 : index
    %c0_7 = arith.constant 0 : index
    %12 = vector.load %arg4[%c0_6, %c0_7] : memref<16x128xf32, #tpu.memory_space<vmem>>, vector<16x128xf32>
    tpu.vector_store %arg4[%c0_6, %c0_7], %11 {strides = array<i32>} : memref<16x128xf32, #tpu.memory_space<vmem>>, vector<16x128xf32>,
    return
  }
  func.func @transform_0(%arg0: i32) -> (i32, i32) {
    %c0_i32 = arith.constant 0 : i32
    %c0_i32_0 = arith.constant 0 : i32
    return %arg0, %c0_i32 : i32, i32
  }
  func.func @transform_1(%arg0: i32) -> (i32, i32) {
    %c0_i32 = arith.constant 0 : i32
    %c0_i32_0 = arith.constant 0 : i32
    %c0_i32_1 = arith.constant 0 : i32
    return %c0_i32, %c0_i32_0 : i32, i32
  }
  func.func @transform_2(%arg0: i32) -> (i32, i32) {
    %c0_i32 = arith.constant 0 : i32
    %c0_i32_0 = arith.constant 0 : i32
    return %arg0, %c0_i32 : i32, i32
  }
  func.func @transform_3(%arg0: i32) -> (i32, i32) {
    %c0_i32 = arith.constant 0 : i32
    %c0_i32_0 = arith.constant 0 : i32
    return %arg0, %c0_i32 : i32, i32
  }
}

</mosaic_0001>

<llo_original>
// kernel: tpu_custom_call.1
$region0: #{tpu_custom_call.1}
  #allocation0 [shape = 'u32[]', space=smem, size = 0x4, offset = 0x4, fixed_abs, tag = 'smem constant byte address 0x4 - core index']
  #allocation1 [shape = 'u32[144,128]{1,0:T(1,128)}', space=vmem, size = 0x12000, scoped, tag = 'internal scratch']
  %s0 = inlined_call_operand.vmem [shape: s32[16,1], index: 0, kind: input, shape index: {}]
  %s1 = inlined_call_operand.hbm [shape: f32[64,128], index: 1, kind: input, shape index: {}]
  %s2 = inlined_call_operand.vmem [shape: f32[16,128], index: 2, kind: input, shape index: {}]
  %s3 = inlined_call_operand.hbm [shape: f32[16,128], index: 3, kind: output, shape index: {}]
  %s4 = sld [smem:[#allocation0]]
  $region26: #{tpu_custom_call.1} parent=0
    _
  %s6 = ssub.s32 1, %s4
  %s7 = scalar_select 0, %s6, %s4
  $region1: #{tpu_custom_call.1} parent=0
    #allocation2 [shape = 'u8[32768]{0}', space=vmem, size = 0x8000, scoped, tag = 'input window, operand 1, single buffered']
    #allocation3 [shape = 's32[1]{0}', space=sflag, size = 0x4, scoped, tag = 'scoped memory for tpu_custom_call.1']
    #allocation4 [shape = 's32[1]{0}', space=sflag, size = 0x4, scoped, tag = 'scoped memory for tpu_custom_call.1']
    #allocation5 [shape = 'u8[8192]{0}', space=vmem, size = 0x2000, scoped, tag = 'output window, operand 0, single buffered']
    %8 = vsyncpa [#allocation3], 0
    %9 = vsyncpa [#allocation4], 0
    // Predicated region
    $region2: #{tpu_custom_call.1} parent=1 // pred_check
      _
    $region3: #{tpu_custom_call.1} parent=1 // pred_check_branch
      %11 = sbr.rel (0) target = $region5
    $region4: #{tpu_custom_call.1} parent=1 // pred_region
      _
    $region5: #{tpu_custom_call.1} parent=1 // pred_fallthru
      _
    // Predicated region
    $region6: #{tpu_custom_call.1} parent=1 // pred_check
      _
    $region7: #{tpu_custom_call.1} parent=1 // pred_check_branch
      %13 = sbr.rel (0) target = $region9
    $region8: #{tpu_custom_call.1} parent=1 // pred_region
      %s15 = ssub.s32 1024, 1024
      %16 = vsyncadd [#allocation3], %s15
      %s17 = sshll.u32 [#allocation2], 4
      %s18 = int_to_ptr.vmem [resolvable:$true] %s17
      %23 = dma.hbm_to_vmem [thread:$0]  %s1, 1024, %s18, [#allocation3], 128, 128, 8
    $region9: #{tpu_custom_call.1} parent=1 // pred_fallthru
      _
    // Predicated region
    $region10: #{tpu_custom_call.1} parent=1 // pred_check
      _
    $region11: #{tpu_custom_call.1} parent=1 // pred_check_branch
      %25 = sbr.rel (0) target = $region13
    $region12: #{tpu_custom_call.1} parent=1 // pred_region
      _
    $region13: #{tpu_custom_call.1} parent=1 // pred_fallthru
      _
    // Predicated region
    $region14: #{tpu_custom_call.1} parent=1 // pred_check
      _
    $region15: #{tpu_custom_call.1} parent=1 // pred_check_branch
      %27 = sbr.rel (0) target = $region17
    $region16: #{tpu_custom_call.1} parent=1 // pred_region
      %28 = dma.done [#allocation3], 1024
    $region17: #{tpu_custom_call.1} parent=1 // pred_fallthru
      _
    %v29 = vld [vmem:[%s0] sm:$0xff]
    %v30 = vld [vmem:[%s0 + $0x8] sm:$0xff]
    %v31 = vld [vmem:[#allocation2] sm:$0xff]
    %v32 = vld [vmem:[#allocation2 + $0x8] sm:$0xff]
    %v33 = vld [vmem:[#allocation2 + $0x10] sm:$0xff]
    %v34 = vld [vmem:[#allocation2 + $0x18] sm:$0xff]
    %v35 = vld [vmem:[#allocation2 + $0x20] sm:$0xff]
    %v36 = vld [vmem:[#allocation2 + $0x28] sm:$0xff]
    %v37 = vld [vmem:[#allocation2 + $0x30] sm:$0xff]
    %v38 = vld [vmem:[#allocation2 + $0x38] sm:$0xff]
    %v39 = vld [vmem:[%s2] sm:$0xff]
    %v40 = vld [vmem:[%s2 + $0x8] sm:$0xff]
    %v41 = vlaneseq
    %v42 = vand.u32 %v41, 127
    %43 = vset.pattern.permute.xlu0 0
    %44 = vperm.xlu0 %43, %v29
    %v45 = vpop.permute.xlu0 %44
    %46 = vset.pattern.permute.xlu0 0
    %47 = vperm.xlu0 %46, %v30
    %v48 = vpop.permute.xlu0 %47
    %vm49 = vcmp.eq.s32.totalorder %v42, %v45
    %vm50 = vcmp.eq.s32.totalorder %v42, %v48
    %v51 = vsel %vm49, 1, 0
    %v52 = vsel %vm50, 1, 0
    %v53 = vcvt.s32.f32 %v51
    %v54 = vcvt.s32.f32 %v52
    %vm55 = vcmask 523264
    %v57 = vsel %vm55, %v53, 0
    %v60 = vsel %vm55, %v54, 0
    %62 = vmatprep.subr.mxu0 0.0
    %63 = vmatpush1.msra.mxu0 %v31
    %64 = vmatprep.subr.mxu0 0.0
    %65 = vmatpush1.msra.mxu0 %v32
    %66 = vmatprep.subr.mxu0 0.0
    %67 = vmatpush1.msra.mxu0 %v33
    %68 = vmatprep.subr.mxu0 0.0
    %69 = vmatpush1.msra.mxu0 %v34
    %70 = vmatprep.subr.mxu0 0.0
    %71 = vmatpush1.msra.mxu0 %v35
    %72 = vmatprep.subr.mxu0 0.0
    %73 = vmatpush1.msra.mxu0 %v36
    %74 = vmatprep.subr.mxu0 0.0
    %75 = vmatpush1.msra.mxu0 %v37
    %76 = vmatprep.subr.mxu0 0.0
    %77 = vmatpush1.msra.mxu0 %v38
    %78 = vmatprep.subr.mxu0 0.0
    %79 = vmatpush1.msra.mxu0 0.0
    %80 = vmatprep.subr.mxu0 0.0
    %81 = vmatpush1.msra.mxu0 0.0
    %82 = vmatprep.subr.mxu0 0.0
    %83 = vmatpush1.msra.mxu0 0.0
    %84 = vmatprep.subr.mxu0 0.0
    %85 = vmatpush1.msra.mxu0 0.0
    %86 = vmatprep.subr.mxu0 0.0
    %87 = vmatpush1.msra.mxu0 0.0
    %88 = vmatprep.subr.mxu0 0.0
    %89 = vmatpush1.msra.mxu0 0.0
    %90 = vmatprep.subr.mxu0 0.0
    %91 = vmatpush1.msra.mxu0 0.0
    %92 = vmatprep.subr.mxu0 0.0
    %93 = vmatpush1.msra.mxu0 0.0
    %94 = vmatprep.subr.mxu0 0.0
    %95 = vmatpush1.msra.mxu0 0.0
    %96 = vmatprep.subr.mxu0 0.0
    %97 = vmatpush1.msra.mxu0 0.0
    %98 = vmatprep.subr.mxu0 0.0
    %99 = vmatpush1.msra.mxu0 0.0
    %100 = vmatprep.subr.mxu0 0.0
    %101 = vmatpush1.msra.mxu0 0.0
    %102 = vmatprep.subr.mxu0 0.0
    %103 = vmatpush1.msra.mxu0 0.0
    %104 = vmatprep.subr.mxu0 0.0
    %105 = vmatpush1.msra.mxu0 0.0
    %106 = vmatprep.subr.mxu0 0.0
    %107 = vmatpush1.msra.mxu0 0.0
    %108 = vmatprep.subr.mxu0 0.0
    %109 = vmatpush1.msra.mxu0 0.0
    %110 = vmatprep.subr.mxu0 0.0
    %111 = vmatpush1.msra.mxu0 0.0
    %112 = vmatprep.subr.mxu0 0.0
    %113 = vmatpush1.msra.mxu0 0.0
    %114 = vmatprep.subr.mxu0 0.0
    %115 = vmatpush1.msra.mxu0 0.0
    %116 = vmatprep.subr.mxu0 0.0
    %117 = vmatpush1.msra.mxu0 0.0
    %118 = vmatprep.subr.mxu0 0.0
    %119 = vmatpush1.msra.mxu0 0.0
    %120 = vmatprep.subr.mxu0 0.0
    %121 = vmatpush1.msra.mxu0 0.0
    %122 = vmatprep.subr.mxu0 0.0
    %123 = vmatpush1.msra.mxu0 0.0
    %124 = vmatprep.subr.mxu0 0.0
    %125 = vmatpush1.msra.mxu0 0.0
    %126 = vmatprep.mubr.f32.mxu0 0.0
    %127 = vmatmul.mubr.f32.gmra.mrb[0].mxu0 %v57
    %v128 = vpop.f32.mrb[0].mxu0
    %v129 = vadd.f32 0.0, %v128
    %v130 = vpop.f32.mrb[0].mxu0
    %131 = vmatprep.mubr.f32.mxu0 0.0
    %132 = vmatmul.mubr.f32.gmra.mrb[0].mxu0 %v60
    %v133 = vpop.f32.mrb[0].mxu0
    %v134 = vadd.f32 0.0, %v133
    %v135 = vpop.f32.mrb[0].mxu0
    %136 = vdwg.mxu0
    %v137 = vadd.f32 %v39, %v129
    %v138 = vadd.f32 %v40, %v134
    %139 = vst [vmem:[#allocation5] sm:$0xff] %v137
    %140 = vst [vmem:[#allocation5 + $0x8] sm:$0xff] %v138
    // Predicated region
    $region18: #{tpu_custom_call.1} parent=1 // pred_check
      _
    $region19: #{tpu_custom_call.1} parent=1 // pred_check_branch
      %142 = sbr.rel (0) target = $region21
    $region20: #{tpu_custom_call.1} parent=1 // pred_region
      %s144 = ssub.s32 256, 256
      %145 = vsyncadd [#allocation4], %s144
      %s146 = sshll.u32 [#allocation5], 4
      %s147 = int_to_ptr.vmem [resolvable:$true] %s146
      %152 = dma.vmem_to_hbm [thread:$0]  %s147, 256, %s3, [#allocation4], 128, 128, 8
    $region21: #{tpu_custom_call.1} parent=1 // pred_fallthru
      _
    // Predicated region
    $region22: #{tpu_custom_call.1} parent=1 // pred_check
      _
    $region23: #{tpu_custom_call.1} parent=1 // pred_check_branch
      %154 = sbr.rel (0) target = $region25
    $region24: #{tpu_custom_call.1} parent=1 // pred_region
      %155 = dma.done [#allocation4], 256
    $region25: #{tpu_custom_call.1} parent=1 // pred_fallthru
      _
    %156 = vsyncpa [#allocation3], 1
    %157 = vsyncpa [#allocation4], 1

</llo_original>
